<compile_context>
chip_gen: v6e
topology: v6e:2x2x1
jax: 0.10.0
libtpu: 0.0.40
codegen_flags: <defaults>
</compile_context>

<pallas_src>
import jax
import jax.numpy as jnp
from jax import lax
from jax.experimental import pallas as pl
from jax.experimental.pallas import tpu as pltpu


def _round_up(x: int, m: int) -> int:
    return ((x + m - 1) // m) * m


# --------------------------------------------------------------------------
# Kernel
# --------------------------------------------------------------------------
def _make_kernel(n_hidden: int, has_last: bool, max_unrolled_hidden: int = 8):
    """Build the fused-MLP kernel for a given layer structure."""

    def kernel(*refs):
        it = iter(refs)
        x_ref = next(it)
        w0_ref = next(it)
        b0_ref = next(it)
        wh_ref = bh_ref = wl_ref = bl_ref = None
        if n_hidden > 0:
            wh_ref = next(it)
            bh_ref = next(it)
        if has_last:
            wl_ref = next(it)
            bl_ref = next(it)
        o_ref = next(it)

        cdt = w0_ref.dtype  # compute dtype for the MXU (bf16 by default)

        def layer(h, w, b, relu):
            h = jnp.dot(h.astype(cdt), w, preferred_element_type=jnp.float32)
            h = h + b.astype(jnp.float32)
            return jnp.maximum(h, 0.0) if relu else h

        # First layer (ReLU only if it is not also the last layer).
        h = layer(x_ref[...], w0_ref[...], b0_ref[...], relu=has_last)

        # Hidden layers (all (Dh_p, Dh_p); ReLU after each).
        if n_hidden > 0:
            if n_hidden <= max_unrolled_hidden:
                for l in range(n_hidden):
                    h = layer(h, wh_ref[l], bh_ref[pl.ds(l, 1), :], relu=True)
            else:
                def body(l, h):
                    return layer(h, wh_ref[l], bh_ref[pl.ds(l, 1), :], relu=True)
                h = lax.fori_loop(0, n_hidden, body, h)

        # Last layer (no ReLU).
        if has_last:
            h = layer(h, wl_ref[...], bl_ref[...], relu=False)

        o_ref[...] = h.astype(o_ref.dtype)

    return kernel


# --------------------------------------------------------------------------
# Host-side helpers
# --------------------------------------------------------------------------
def _vmem_budget_bytes() -> int:
    try:
        cap = int(pltpu.get_tpu_info().vmem_capacity_bytes)
    except Exception:
        cap = 64 * 1024 * 1024  # conservative: v7x per-TensorCore VMEM
    return cap * 3 // 4


def _resident_spec(shape, single_buffer: bool) -> pl.BlockSpec:
    """Full-array block, constant index map (weights stay resident in VMEM)."""
    ndim = len(shape)
    index_map = lambda i: (0,) * ndim
    if single_buffer:
        # Constant index map => double buffering buys nothing; single-buffer
        # halves the resident weight footprint (matters on v7x's 64 MiB VMEM).
        return pl.BlockSpec(shape, index_map, pipeline_mode=pl.Buffered(1))
    return pl.BlockSpec(shape, index_map)


def _choose_tm(B: int, din_p: int, dout_p: int, x_itemsize: int,
               act_budget: int = 16 << 20) -> int:
    if B <= 8:
        return _round_up(B, 8)
    # Bytes of pipelined (double-buffered) in/out activation tiles per row.
    per_row = 2 * (din_p + dout_p) * x_itemsize
    tm_vmem = max(8, (act_budget // per_row) // 8 * 8)
    # >=2 M tiles when B permits (both TensorCores on v7x), up to 512 rows to
    # amortize the ~0.35us per grid step and keep the MXU fed in M.
    return max(8, min(512, tm_vmem, _round_up(pl.cdiv(B, 2), 8)))


def prepare_params(params, compute_dtype=jnp.bfloat16):
    """One-time padding / stacking / casting of the (W, b) list.

    params: list of (W, b), W: (in_features, out_features), b: (out_features,)
    Weights are cast to `compute_dtype` (bf16 default: single-pass MXU, half
    the DMA/VMEM bytes); biases stay f32 (bias add + accumulation are f32).
    """
    n_layer = len(params)
    input_dim = int(params[0][0].shape[0])
    output_dim = int(params[-1][0].shape[1])
    din_p = _round_up(input_dim, 128)
    dout_p = _round_up(output_dim, 128)

    if n_layer == 1:
        hidden_dim, dh_p = None, None
    else:
        hidden_dim = int(params[0][0].shape[1])
        for (w, _) in params[1:-1]:
            assert w.shape == (hidden_dim, hidden_dim)
        assert params[-1][0].shape[0] == hidden_dim
        dh_p = _round_up(hidden_dim, 128)

    def pad_w(w, rows_p, cols_p):
        return jnp.pad(w.astype(compute_dtype),
                       ((0, rows_p - w.shape[0]), (0, cols_p - w.shape[1])))

    def pad_b_row(b, cols_p):                       # -> (1, cols_p) f32
        return jnp.pad(b.astype(jnp.float32), (0, cols_p - b.shape[0]))[None, :]

    first_out_p = dout_p if n_layer == 1 else dh_p
    w_first = pad_w(params[0][0], din_p, first_out_p)
    b_first = pad_b_row(params[0][1], first_out_p)

    n_hidden = max(n_layer - 2, 0)
    w_hidden = b_hidden = None
    if n_hidden > 0:
        w_hidden = jnp.stack([pad_w(w, dh_p, dh_p) for (w, _) in params[1:-1]])
        b_hidden = jnp.stack(                        # (n_hidden, dh_p), 2-D
            [jnp.pad(b.astype(jnp.float32), (0, dh_p - b.shape[0]))
             for (_, b) in params[1:-1]])

    w_last = b_last = None
    if n_layer >= 2:
        w_last = pad_w(params[-1][0], dh_p, dout_p)
        b_last = pad_b_row(params[-1][1], dout_p)

    return dict(n_layer=n_layer, n_hidden=n_hidden,
                input_dim=input_dim, output_dim=output_dim,
                din_p=din_p, dh_p=dh_p, dout_p=dout_p,
                w_first=w_first, b_first=b_first,
                w_hidden=w_hidden, b_hidden=b_hidden,
                w_last=w_last, b_last=b_last)


def _forward_padded(x_pad, p, tm, single_buffer_weights):
    Bp, din_p = x_pad.shape
    n_hidden = p["n_hidden"]
    has_last = p["n_layer"] >= 2
    dout_p, dh_p = p["dout_p"], p["dh_p"]
    x_bytes = jnp.dtype(x_pad.dtype).itemsize
    grid_m = Bp // tm

    operands = [x_pad, p["w_first"], p["b_first"]]
    in_specs = [pl.BlockSpec((tm, din_p), lambda i: (i, 0)),
                _resident_spec(p["w_first"].shape, single_buffer_weights),
                _resident_spec(p["b_first"].shape, single_buffer_weights)]
    if n_hidden > 0:
        operands += [p["w_hidden"], p["b_hidden"]]
        in_specs += [_resident_spec(p["w_hidden"].shape, single_buffer_weights),
                     _resident_spec(p["b_hidden"].shape, single_buffer_weights)]
    if has_last:
        operands += [p["w_last"], p["b_last"]]
        in_specs += [_resident_spec(p["w_last"].shape, single_buffer_weights),
                     _resident_spec(p["b_last"].shape, single_buffer_weights)]

    # ---- VMEM accounting (buffers as laid out in VMEM) --------------------
    def vmem_bytes(a):
        s = a.shape
        rows = _round_up(s[-2], 8) if len(s) >= 2 else 1
        lead = 1
        for d in s[:-2]:
            lead *= d
        return lead * rows * s[-1] * jnp.dtype(a.dtype).itemsize

    nbuf = 1 if single_buffer_weights else 2
    weight_bytes = sum(vmem_bytes(a) for a in operands[1:])
    act_tiles = 2 * tm * din_p * x_bytes + 2 * tm * dout_p * x_bytes
    max_dp = max(dp for dp in (din_p, dout_p, dh_p) if dp)
    h_tmp = 2 * tm * max_dp * 4                  # f32 activation temporaries
    vmem_needed = act_tiles + nbuf * weight_bytes + h_tmp

    budget = _vmem_budget_bytes()
    if vmem_needed > budget:
        # TODO(synk): switch to a K/N-tiled accumulator variant when the
        # resident weight stack exceeds the per-core VMEM budget.
        raise ValueError(
            f"fused weight stack too large for VMEM ({vmem_needed} > {budget} bytes)")
    vmem_limit = int(min(budget, vmem_needed + (8 << 20)))

    # ---- cost estimate -----------------------------------------------------
    flops = 2 * Bp * din_p * p["w_first"].shape[1]
    if n_hidden > 0:
        flops += 2 * Bp * n_hidden * dh_p * dh_p
    if has_last:
        flops += 2 * Bp * dh_p * dout_p
    bytes_accessed = (Bp * din_p * x_bytes + Bp * dout_p * x_bytes
                      + sum(a.size * jnp.dtype(a.dtype).itemsize
                            for a in operands[1:]))

    kernel = _make_kernel(n_hidden=n_hidden, has_last=has_last)
    return pl.pallas_call(
        kernel,
        out_shape=jax.ShapeDtypeStruct((Bp, dout_p), x_pad.dtype),
        grid=(grid_m,),
        in_specs=in_specs,
        out_specs=pl.BlockSpec((tm, dout_p), lambda i: (i, 0)),
        compiler_params=pltpu.CompilerParams(
            dimension_semantics=("parallel",),   # shard M tiles across TCs (v7x)
            vmem_limit_bytes=vmem_limit),
        cost_estimate=pl.CostEstimate(
            flops=flops, transcendentals=0, bytes_accessed=bytes_accessed),
    )(*operands)


def reg_fc_output_model(x, prepared):
    """Forward pass identical to RegFCOutputModel.forward (fused kernel).

    x: (B, input_dim); prepared: output of prepare_params().
    """
    B, input_dim = x.shape
    assert input_dim == prepared["input_dim"]
    din_p, dout_p = prepared["din_p"], prepared["dout_p"]

    tm = _choose_tm(B, din_p, dout_p, jnp.dtype(x.dtype).itemsize)
    Bp = _round_up(B, tm)

    pad_r, pad_c = Bp - B, din_p - input_dim
    x_pad = jnp.pad(x, ((0, pad_r), (0, pad_c))) if (pad_r or pad_c) else x

    try:
        out_pad = _forward_padded(x_pad, prepared, tm, single_buffer_weights=True)
    except Exception:
        # pl.Buffered(1) not supported by this jax/libtpu combo -> default
        # double-buffered resident weights (correctness unchanged).
        out_pad = _forward_padded(x_pad, prepared, tm, single_buffer_weights=False)

    return out_pad[:B, :prepared["output_dim"]]


# --------------------------------------------------------------------------
# Init / reference (mirrors the PyTorch module)
# --------------------------------------------------------------------------
def init_reg_fc_params(key, n_layer, input_dim, hidden_dim, output_dim,
                       dtype=jnp.float32):
    """Layer shapes as in the torch module; W already (in_features, out_features)."""
    if n_layer == 1:
        dims = [(input_dim, output_dim)]
    else:
        dims = [(input_dim, hidden_dim)]
        dims += [(hidden_dim, hidden_dim)] * (n_layer - 2)
        dims += [(hidden_dim, int(output_dim))]

    params = []
    for (fan_in, fan_out) in dims:
        key, kw, kb = jax.random.split(key, 3)
        bound = float(1.0 / (fan_in ** 0.5))   # torch default U(-1/sqrt, 1/sqrt)
        w = jax.random.uniform(kw, (fan_in, fan_out), dtype, -bound, bound)
        b = jax.random.uniform(kb, (fan_out,), dtype, -bound, bound)
        params.append((w, b))
    return params


def _reference(x, params):
    h = x
    for i, (w, b) in enumerate(params):
        h = h @ w + b
        if i < len(params) - 1:
            h = jnp.maximum(h, 0.0)
    return h


if __name__ == "__main__":
    key = jax.random.PRNGKey(0)
    k_x, k_p, k_p1, k_p2 = jax.random.split(key, 4)

    n_layer, batch, input_dim, hidden_dim, output_dim = 3, 8, 32, 32, 16
    x = jax.random.normal(k_x, (batch, input_dim), jnp.float32)
    params = init_reg_fc_params(k_p, n_layer, input_dim, hidden_dim, output_dim)
    ref = _reference(x, params)

    # f32 compute path: tight match against the f32 torch-style reference.
    prep_f32 = prepare_params(params, compute_dtype=jnp.float32)
    out = jax.block_until_ready(reg_fc_output_model(x, prep_f32))
    assert out.shape == (batch, output_dim)
    assert jnp.allclose(out, ref, atol=1e-4, rtol=1e-4)

    # Default bf16-weight path (faster on v6e/v7x); looser tolerance expected.
    prep_bf16 = prepare_params(params)
    out_bf = jax.block_until_ready(reg_fc_output_model(x, prep_bf16))
    assert out_bf.shape == (batch, output_dim)
    assert jnp.allclose(out_bf, ref, atol=5e-2, rtol=5e-2)

    # n_layer == 1 (single Linear, no ReLU).
    params1 = init_reg_fc_params(k_p1, 1, input_dim, hidden_dim, output_dim)
    prep1 = prepare_params(params1, compute_dtype=jnp.float32)
    out1 = jax.block_until_ready(reg_fc_output_model(x, prep1))
    assert out1.shape == (batch, output_dim)
    assert jnp.allclose(out1, _reference(x, params1), atol=1e-4, rtol=1e-4)

    # n_layer == 2 (first + last layer, no hidden stack).
    params2 = init_reg_fc_params(k_p2, 2, input_dim, hidden_dim, output_dim)
    prep2 = prepare_params(params2, compute_dtype=jnp.float32)
    out2 = jax.block_until_ready(reg_fc_output_model(x, prep2))
    assert out2.shape == (batch, output_dim)
    assert jnp.allclose(out2, _reference(x, params2), atol=1e-4, rtol=1e-4)

    print("KERNEL_OK")
</pallas_src>

<mosaic_0001>
module attributes {stable_mosaic.version = 11 : i64} {
  func.func @kernel(%arg0: i32, %arg1: memref<8x128xf32, #tpu.memory_space<vmem>>, %arg2: memref<128x128xf32, #tpu.memory_space<vmem>>, %arg3: memref<1x128xf32, #tpu.memory_space<vmem>>, %arg4: memref<1x128x128xf32, #tpu.memory_space<vmem>>, %arg5: memref<1x128xf32, #tpu.memory_space<vmem>>, %arg6: memref<128x128xf32, #tpu.memory_space<vmem>>, %arg7: memref<1x128xf32, #tpu.memory_space<vmem>>, %arg8: memref<8x128xf32, #tpu.memory_space<vmem>>) attributes {dimension_semantics = [#tpu.dimension_semantics<parallel>], iteration_bounds = array<i64: 1>, scalar_prefetch = 0 : i64, scratch_operands = 0 : i64, tpu.core_type = #tpu.core_type<tc>, window_params = [{transform_indices = @transform_0, window_bounds = array<i64: 8, 128>}, {pipeline_mode = #tpu.pipeline_mode<synchronous>, transform_indices = @transform_1, window_bounds = array<i64: 128, 128>}, {pipeline_mode = #tpu.pipeline_mode<synchronous>, transform_indices = @transform_2, window_bounds = array<i64: 1, 128>}, {pipeline_mode = #tpu.pipeline_mode<synchronous>, transform_indices = @transform_3, window_bounds = array<i64: 1, 128, 128>}, {pipeline_mode = #tpu.pipeline_mode<synchronous>, transform_indices = @transform_4, window_bounds = array<i64: 1, 128>}, {pipeline_mode = #tpu.pipeline_mode<synchronous>, transform_indices = @transform_5, window_bounds = array<i64: 128, 128>}, {pipeline_mode = #tpu.pipeline_mode<synchronous>, transform_indices = @transform_6, window_bounds = array<i64: 1, 128>}, {transform_indices = @transform_7, window_bounds = array<i64: 8, 128>}]} {
    %c0 = arith.constant 0 : index
    %c0_0 = arith.constant 0 : index
    %0 = vector.load %arg1[%c0, %c0_0] : memref<8x128xf32, #tpu.memory_space<vmem>>, vector<8x128xf32>
    %c0_1 = arith.constant 0 : index
    %c0_2 = arith.constant 0 : index
    %1 = vector.load %arg2[%c0_1, %c0_2] : memref<128x128xf32, #tpu.memory_space<vmem>>, vector<128x128xf32>
    %c0_3 = arith.constant 0 : index
    %c0_4 = arith.constant 0 : index
    %2 = vector.load %arg3[%c0_3, %c0_4] : memref<1x128xf32, #tpu.memory_space<vmem>>, vector<1x128xf32>
    %cst = arith.constant dense<0.000000e+00> : vector<8x128xf32>
    %3 = tpu.matmul %0, %1, %cst {dimension_numbers = #tpu.dot_dimension_numbers<[1], [0], [0], [1], [0, 0, 1, 1], [], []>} : vector<8x128xf32>, vector<128x128xf32>, vector<8x128xf32> -> vector<8x128xf32>
    %4 = vector.broadcast %2 : vector<1x128xf32> to vector<8x128xf32>
    %5 = arith.addf %3, %4 : vector<8x128xf32>
    %cst_5 = arith.constant 0.000000e+00 : f32
    %6 = vector.broadcast %cst_5 : f32 to vector<8x128xf32>
    %7 = arith.maximumf %5, %6 : vector<8x128xf32>
    %c0_6 = arith.constant 0 : index
    %c0_7 = arith.constant 0 : index
    %c0_8 = arith.constant 0 : index
    %8 = vector.load %arg4[%c0_6, %c0_7, %c0_8] : memref<1x128x128xf32, #tpu.memory_space<vmem>>, vector<1x128x128xf32>
    %9 = vector.shape_cast %8 : vector<1x128x128xf32> to vector<128x128xf32>
    %c0_9 = arith.constant 0 : index
    %c0_10 = arith.constant 0 : index
    %10 = vector.load %arg5[%c0_9, %c0_10] : memref<1x128xf32, #tpu.memory_space<vmem>>, vector<1x128xf32>
    %cst_11 = arith.constant dense<0.000000e+00> : vector<8x128xf32>
    %11 = tpu.matmul %7, %9, %cst_11 {dimension_numbers = #tpu.dot_dimension_numbers<[1], [0], [0], [1], [0, 0, 1, 1], [], []>} : vector<8x128xf32>, vector<128x128xf32>, vector<8x128xf32> -> vector<8x128xf32>
    %12 = vector.broadcast %10 : vector<1x128xf32> to vector<8x128xf32>
    %13 = arith.addf %11, %12 : vector<8x128xf32>
    %cst_12 = arith.constant 0.000000e+00 : f32
    %14 = vector.broadcast %cst_12 : f32 to vector<8x128xf32>
    %15 = arith.maximumf %13, %14 : vector<8x128xf32>
    %c0_13 = arith.constant 0 : index
    %c0_14 = arith.constant 0 : index
    %16 = vector.load %arg6[%c0_13, %c0_14] : memref<128x128xf32, #tpu.memory_space<vmem>>, vector<128x128xf32>
    %c0_15 = arith.constant 0 : index
    %c0_16 = arith.constant 0 : index
    %17 = vector.load %arg7[%c0_15, %c0_16] : memref<1x128xf32, #tpu.memory_space<vmem>>, vector<1x128xf32>
    %cst_17 = arith.constant dense<0.000000e+00> : vector<8x128xf32>
    %18 = tpu.matmul %15, %16, %cst_17 {dimension_numbers = #tpu.dot_dimension_numbers<[1], [0], [0], [1], [0, 0, 1, 1], [], []>} : vector<8x128xf32>, vector<128x128xf32>, vector<8x128xf32> -> vector<8x128xf32>
    %19 = vector.broadcast %17 : vector<1x128xf32> to vector<8x128xf32>
    %20 = arith.addf %18, %19 : vector<8x128xf32>
    %c0_18 = arith.constant 0 : index
    %c0_19 = arith.constant 0 : index
    %21 = vector.load %arg8[%c0_18, %c0_19] : memref<8x128xf32, #tpu.memory_space<vmem>>, vector<8x128xf32>
    tpu.vector_store %arg8[%c0_18, %c0_19], %20 {strides = array<i32>} : memref<8x128xf32, #tpu.memory_space<vmem>>, vector<8x128xf32>,
    return
  }
  func.func @transform_0(%arg0: i32) -> (i32, i32) {
    %c0_i32 = arith.constant 0 : i32
    %c0_i32_0 = arith.constant 0 : i32
    return %arg0, %c0_i32 : i32, i32
  }
  func.func @transform_1(%arg0: i32) -> (i32, i32) {
    %c0_i32 = arith.constant 0 : i32
    %c0_i32_0 = arith.constant 0 : i32
    %c0_i32_1 = arith.constant 0 : i32
    return %c0_i32, %c0_i32_0 : i32, i32
  }
  func.func @transform_2(%arg0: i32) -> (i32, i32) {
    %c0_i32 = arith.constant 0 : i32
    %c0_i32_0 = arith.constant 0 : i32
    %c0_i32_1 = arith.constant 0 : i32
    return %c0_i32, %c0_i32_0 : i32, i32
  }
  func.func @transform_3(%arg0: i32) -> (i32, i32, i32) {
    %c0_i32 = arith.constant 0 : i32
    %c0_i32_0 = arith.constant 0 : i32
    %c0_i32_1 = arith.constant 0 : i32
    %c0_i32_2 = arith.constant 0 : i32
    return %c0_i32, %c0_i32_0, %c0_i32_1 : i32, i32, i32
  }
  func.func @transform_4(%arg0: i32) -> (i32, i32) {
    %c0_i32 = arith.constant 0 : i32
    %c0_i32_0 = arith.constant 0 : i32
    %c0_i32_1 = arith.constant 0 : i32
    return %c0_i32, %c0_i32_0 : i32, i32
  }
  func.func @transform_5(%arg0: i32) -> (i32, i32) {
    %c0_i32 = arith.constant 0 : i32
    %c0_i32_0 = arith.constant 0 : i32
    %c0_i32_1 = arith.constant 0 : i32
    return %c0_i32, %c0_i32_0 : i32, i32
  }
  func.func @transform_6(%arg0: i32) -> (i32, i32) {
    %c0_i32 = arith.constant 0 : i32
    %c0_i32_0 = arith.constant 0 : i32
    %c0_i32_1 = arith.constant 0 : i32
    return %c0_i32, %c0_i32_0 : i32, i32
  }
  func.func @transform_7(%arg0: i32) -> (i32, i32) {
    %c0_i32 = arith.constant 0 : i32
    %c0_i32_0 = arith.constant 0 : i32
    return %arg0, %c0_i32 : i32, i32
  }
}

module attributes {stable_mosaic.version = 11 : i64} {
  func.func @kernel(%arg0: i32, %arg1: memref<8x128xf32, #tpu.memory_space<vmem>>, %arg2: memref<128x128xf32, #tpu.memory_space<vmem>>, %arg3: memref<1x128xf32, #tpu.memory_space<vmem>>, %arg4: memref<1x128x128xf32, #tpu.memory_space<vmem>>, %arg5: memref<1x128xf32, #tpu.memory_space<vmem>>, %arg6: memref<128x128xf32, #tpu.memory_space<vmem>>, %arg7: memref<1x128xf32, #tpu.memory_space<vmem>>, %arg8: memref<8x128xf32, #tpu.memory_space<vmem>>) attributes {dimension_semantics = [#tpu.dimension_semantics<parallel>], iteration_bounds = array<i64: 1>, scalar_prefetch = 0 : i64, scratch_operands = 0 : i64, tpu.core_type = #tpu.core_type<tc>, window_params = [{transform_indices = @transform_0, window_bounds = array<i64: 8, 128>}, {pipeline_mode = #tpu.pipeline_mode<synchronous>, transform_indices = @transform_1, window_bounds = array<i64: 128, 128>}, {pipeline_mode = #tpu.pipeline_mode<synchronous>, transform_indices = @transform_2, window_bounds = array<i64: 1, 128>}, {pipeline_mode = #tpu.pipeline_mode<synchronous>, transform_indices = @transform_3, window_bounds = array<i64: 1, 128, 128>}, {pipeline_mode = #tpu.pipeline_mode<synchronous>, transform_indices = @transform_4, window_bounds = array<i64: 1, 128>}, {pipeline_mode = #tpu.pipeline_mode<synchronous>, transform_indices = @transform_5, window_bounds = array<i64: 128, 128>}, {pipeline_mode = #tpu.pipeline_mode<synchronous>, transform_indices = @transform_6, window_bounds = array<i64: 1, 128>}, {transform_indices = @transform_7, window_bounds = array<i64: 8, 128>}]} {
    %c0 = arith.constant 0 : index
    %c0_0 = arith.constant 0 : index
    %0 = vector.load %arg1[%c0, %c0_0] : memref<8x128xf32, #tpu.memory_space<vmem>>, vector<8x128xf32>
    %c0_1 = arith.constant 0 : index
    %c0_2 = arith.constant 0 : index
    %1 = vector.load %arg2[%c0_1, %c0_2] : memref<128x128xf32, #tpu.memory_space<vmem>>, vector<128x128xf32>
    %c0_3 = arith.constant 0 : index
    %c0_4 = arith.constant 0 : index
    %2 = vector.load %arg3[%c0_3, %c0_4] : memref<1x128xf32, #tpu.memory_space<vmem>>, vector<1x128xf32>
    %cst = arith.constant dense<0.000000e+00> : vector<8x128xf32>
    %3 = tpu.matmul %0, %1, %cst {dimension_numbers = #tpu.dot_dimension_numbers<[1], [0], [0], [1], [0, 0, 1, 1], [], []>} : vector<8x128xf32>, vector<128x128xf32>, vector<8x128xf32> -> vector<8x128xf32>
    %4 = vector.broadcast %2 : vector<1x128xf32> to vector<8x128xf32>
    %5 = arith.addf %3, %4 : vector<8x128xf32>
    %cst_5 = arith.constant 0.000000e+00 : f32
    %6 = vector.broadcast %cst_5 : f32 to vector<8x128xf32>
    %7 = arith.maximumf %5, %6 : vector<8x128xf32>
    %c0_6 = arith.constant 0 : index
    %c0_7 = arith.constant 0 : index
    %c0_8 = arith.constant 0 : index
    %8 = vector.load %arg4[%c0_6, %c0_7, %c0_8] : memref<1x128x128xf32, #tpu.memory_space<vmem>>, vector<1x128x128xf32>
    %9 = vector.shape_cast %8 : vector<1x128x128xf32> to vector<128x128xf32>
    %c0_9 = arith.constant 0 : index
    %c0_10 = arith.constant 0 : index
    %10 = vector.load %arg5[%c0_9, %c0_10] : memref<1x128xf32, #tpu.memory_space<vmem>>, vector<1x128xf32>
    %cst_11 = arith.constant dense<0.000000e+00> : vector<8x128xf32>
    %11 = tpu.matmul %7, %9, %cst_11 {dimension_numbers = #tpu.dot_dimension_numbers<[1], [0], [0], [1], [0, 0, 1, 1], [], []>} : vector<8x128xf32>, vector<128x128xf32>, vector<8x128xf32> -> vector<8x128xf32>
    %12 = vector.broadcast %10 : vector<1x128xf32> to vector<8x128xf32>
    %13 = arith.addf %11, %12 : vector<8x128xf32>
    %cst_12 = arith.constant 0.000000e+00 : f32
    %14 = vector.broadcast %cst_12 : f32 to vector<8x128xf32>
    %15 = arith.maximumf %13, %14 : vector<8x128xf32>
    %c0_13 = arith.constant 0 : index
    %c0_14 = arith.constant 0 : index
    %16 = vector.load %arg6[%c0_13, %c0_14] : memref<128x128xf32, #tpu.memory_space<vmem>>, vector<128x128xf32>
    %c0_15 = arith.constant 0 : index
    %c0_16 = arith.constant 0 : index
    %17 = vector.load %arg7[%c0_15, %c0_16] : memref<1x128xf32, #tpu.memory_space<vmem>>, vector<1x128xf32>
    %cst_17 = arith.constant dense<0.000000e+00> : vector<8x128xf32>
    %18 = tpu.matmul %15, %16, %cst_17 {dimension_numbers = #tpu.dot_dimension_numbers<[1], [0], [0], [1], [0, 0, 1, 1], [], []>} : vector<8x128xf32>, vector<128x128xf32>, vector<8x128xf32> -> vector<8x128xf32>
    %19 = vector.broadcast %17 : vector<1x128xf32> to vector<8x128xf32>
    %20 = arith.addf %18, %19 : vector<8x128xf32>
    %c0_18 = arith.constant 0 : index
    %c0_19 = arith.constant 0 : index
    %21 = vector.load %arg8[%c0_18, %c0_19] : memref<8x128xf32, #tpu.memory_space<vmem>>, vector<8x128xf32>
    tpu.vector_store %arg8[%c0_18, %c0_19], %20 {strides = array<i32>} : memref<8x128xf32, #tpu.memory_space<vmem>>, vector<8x128xf32>,
    return
  }
  func.func @transform_0(%arg0: i32) -> (i32, i32) {
    %c0_i32 = arith.constant 0 : i32
    %c0_i32_0 = arith.constant 0 : i32
    return %arg0, %c0_i32 : i32, i32
  }
  func.func @transform_1(%arg0: i32) -> (i32, i32) {
    %c0_i32 = arith.constant 0 : i32
    %c0_i32_0 = arith.constant 0 : i32
    %c0_i32_1 = arith.constant 0 : i32
    return %c0_i32, %c0_i32_0 : i32, i32
  }
  func.func @transform_2(%arg0: i32) -> (i32, i32) {
    %c0_i32 = arith.constant 0 : i32
    %c0_i32_0 = arith.constant 0 : i32
    %c0_i32_1 = arith.constant 0 : i32
    return %c0_i32, %c0_i32_0 : i32, i32
  }
  func.func @transform_3(%arg0: i32) -> (i32, i32, i32) {
    %c0_i32 = arith.constant 0 : i32
    %c0_i32_0 = arith.constant 0 : i32
    %c0_i32_1 = arith.constant 0 : i32
    %c0_i32_2 = arith.constant 0 : i32
    return %c0_i32, %c0_i32_0, %c0_i32_1 : i32, i32, i32
  }
  func.func @transform_4(%arg0: i32) -> (i32, i32) {
    %c0_i32 = arith.constant 0 : i32
    %c0_i32_0 = arith.constant 0 : i32
    %c0_i32_1 = arith.constant 0 : i32
    return %c0_i32, %c0_i32_0 : i32, i32
  }
  func.func @transform_5(%arg0: i32) -> (i32, i32) {
    %c0_i32 = arith.constant 0 : i32
    %c0_i32_0 = arith.constant 0 : i32
    %c0_i32_1 = arith.constant 0 : i32
    return %c0_i32, %c0_i32_0 : i32, i32
  }
  func.func @transform_6(%arg0: i32) -> (i32, i32) {
    %c0_i32 = arith.constant 0 : i32
    %c0_i32_0 = arith.constant 0 : i32
    %c0_i32_1 = arith.constant 0 : i32
    return %c0_i32, %c0_i32_0 : i32, i32
  }
  func.func @transform_7(%arg0: i32) -> (i32, i32) {
    %c0_i32 = arith.constant 0 : i32
    %c0_i32_0 = arith.constant 0 : i32
    return %arg0, %c0_i32 : i32, i32
  }
}

</mosaic_0001>

<llo_original>
// kernel: tpu_custom_call.1
$region0: #{tpu_custom_call.1}
  #allocation0 [shape = 'u32[]', space=smem, size = 0x4, offset = 0x4, fixed_abs, tag = 'smem constant byte address 0x4 - core index']
  #allocation1 [shape = 'u32[144,128]{1,0:T(1,128)}', space=vmem, size = 0x12000, scoped, tag = 'internal scratch']
  %s0 = inlined_call_operand.hbm [shape: f32[8,128], index: 0, kind: input, shape index: {}]
  %s1 = inlined_call_operand.hbm [shape: f32[128,128], index: 1, kind: input, shape index: {}]
  %s2 = inlined_call_operand.vmem [shape: f32[1,128], index: 2, kind: input, shape index: {}]
  %s3 = inlined_call_operand.hbm [shape: f32[1,128,128], index: 3, kind: input, shape index: {}]
  %s4 = inlined_call_operand.vmem [shape: f32[1,128], index: 4, kind: input, shape index: {}]
  %s5 = inlined_call_operand.hbm [shape: f32[128,128], index: 5, kind: input, shape index: {}]
  %s6 = inlined_call_operand.vmem [shape: f32[1,128], index: 6, kind: input, shape index: {}]
  %s7 = inlined_call_operand.hbm [shape: f32[8,128], index: 7, kind: output, shape index: {}]
  %s8 = sld [smem:[#allocation0]]
  $region54: #{tpu_custom_call.1} parent=0
    _
  %s10 = ssub.s32 1, %s8
  %s11 = scalar_select 0, %s10, %s8
  $region1: #{tpu_custom_call.1} parent=0
    #allocation2 [shape = 'u8[4096]{0}', space=vmem, size = 0x1000, scoped, tag = 'input window, operand 0, single buffered']
    #allocation3 [shape = 's32[1]{0}', space=sflag, size = 0x4, scoped, tag = 'scoped memory for tpu_custom_call.1']
    #allocation4 [shape = 's32[1]{0}', space=sflag, size = 0x4, scoped, tag = 'scoped memory for tpu_custom_call.1']
    #allocation5 [shape = 'u8[65536]{0}', space=vmem, size = 0x10000, scoped, tag = 'input window, operand 1, single buffered']
    #allocation6 [shape = 's32[1]{0}', space=sflag, size = 0x4, scoped, tag = 'scoped memory for tpu_custom_call.1']
    #allocation7 [shape = 'u8[65536]{0}', space=vmem, size = 0x10000, scoped, tag = 'input window, operand 3, single buffered']
    #allocation8 [shape = 'u8[65536]{0}', space=vmem, size = 0x10000, scoped, tag = 'input window, operand 5, single buffered']
    #allocation9 [shape = 's32[1]{0}', space=sflag, size = 0x4, scoped, tag = 'scoped memory for tpu_custom_call.1']
    #allocation10 [shape = 'u8[4096]{0}', space=vmem, size = 0x1000, scoped, tag = 'output window, operand 0, single buffered']
    %12 = vsyncpa [#allocation3], 0
    %13 = vsyncpa [#allocation6], 0
    %14 = vsyncpa [#allocation9], 0
    %15 = vsyncpa [#allocation4], 0
    // Predicated region
    $region2: #{tpu_custom_call.1} parent=1 // pred_check
      _
    $region3: #{tpu_custom_call.1} parent=1 // pred_check_branch
      %17 = sbr.rel (0) target = $region5
    $region4: #{tpu_custom_call.1} parent=1 // pred_region
      %s19 = ssub.s32 128, 128
      %20 = vsyncadd [#allocation3], %s19
      %s22 = sshll.u32 [#allocation2], 4
      %s23 = int_to_ptr.vmem [resolvable:$true] %s22
      %25 = dma.hbm_to_vmem [thread:$0]  %s0, 128, %s23, [#allocation3]
    $region5: #{tpu_custom_call.1} parent=1 // pred_fallthru
      _
    // Predicated region
    $region6: #{tpu_custom_call.1} parent=1 // pred_check
      _
    $region7: #{tpu_custom_call.1} parent=1 // pred_check_branch
      %27 = sbr.rel (0) target = $region9
    $region8: #{tpu_custom_call.1} parent=1 // pred_region
      %s29 = ssub.s32 2048, 2048
      %30 = vsyncadd [#allocation6], %s29
      %s31 = sshll.u32 [#allocation5], 4
      %s32 = int_to_ptr.vmem [resolvable:$true] %s31
      %37 = dma.hbm_to_vmem [thread:$0]  %s1, 2048, %s32, [#allocation6], 128, 128, 8
    $region9: #{tpu_custom_call.1} parent=1 // pred_fallthru
      _
    // Predicated region
    $region10: #{tpu_custom_call.1} parent=1 // pred_check
      _
    $region11: #{tpu_custom_call.1} parent=1 // pred_check_branch
      %39 = sbr.rel (0) target = $region13
    $region12: #{tpu_custom_call.1} parent=1 // pred_region
      _
    $region13: #{tpu_custom_call.1} parent=1 // pred_fallthru
      _
    // Predicated region
    $region14: #{tpu_custom_call.1} parent=1 // pred_check
      _
    $region15: #{tpu_custom_call.1} parent=1 // pred_check_branch
      %41 = sbr.rel (0) target = $region17
    $region16: #{tpu_custom_call.1} parent=1 // pred_region
      %s43 = ssub.s32 2048, 2048
      %44 = vsyncadd [#allocation6], %s43
      %s45 = sshll.u32 [#allocation7], 4
      %s46 = int_to_ptr.vmem [resolvable:$true] %s45
      %51 = dma.hbm_to_vmem [thread:$0]  %s3, 2048, %s46, [#allocation6], 128, 128, 8
    $region17: #{tpu_custom_call.1} parent=1 // pred_fallthru
      _
    // Predicated region
    $region18: #{tpu_custom_call.1} parent=1 // pred_check
      _
    $region19: #{tpu_custom_call.1} parent=1 // pred_check_branch
      %53 = sbr.rel (0) target = $region21
    $region20: #{tpu_custom_call.1} parent=1 // pred_region
      _
    $region21: #{tpu_custom_call.1} parent=1 // pred_fallthru
      _
    // Predicated region
    $region22: #{tpu_custom_call.1} parent=1 // pred_check
      _
    $region23: #{tpu_custom_call.1} parent=1 // pred_check_branch
      %55 = sbr.rel (0) target = $region25
    $region24: #{tpu_custom_call.1} parent=1 // pred_region
      %s57 = ssub.s32 2048, 2048
      %58 = vsyncadd [#allocation9], %s57
      %s59 = sshll.u32 [#allocation8], 4
      %s60 = int_to_ptr.vmem [resolvable:$true] %s59
      %65 = dma.hbm_to_vmem [thread:$0]  %s5, 2048, %s60, [#allocation9], 128, 128, 8
    $region25: #{tpu_custom_call.1} parent=1 // pred_fallthru
      _
    // Predicated region
    $region26: #{tpu_custom_call.1} parent=1 // pred_check
      _
    $region27: #{tpu_custom_call.1} parent=1 // pred_check_branch
      %67 = sbr.rel (0) target = $region29
    $region28: #{tpu_custom_call.1} parent=1 // pred_region
      _
    $region29: #{tpu_custom_call.1} parent=1 // pred_fallthru
      _
    // Predicated region
    $region30: #{tpu_custom_call.1} parent=1 // pred_check
      _
    $region31: #{tpu_custom_call.1} parent=1 // pred_check_branch
      %69 = sbr.rel (0) target = $region33
    $region32: #{tpu_custom_call.1} parent=1 // pred_region
      %70 = dma.done [#allocation3], 128
    $region33: #{tpu_custom_call.1} parent=1 // pred_fallthru
      _
    // Predicated region
    $region34: #{tpu_custom_call.1} parent=1 // pred_check
      _
    $region35: #{tpu_custom_call.1} parent=1 // pred_check_branch
      %72 = sbr.rel (0) target = $region37
    $region36: #{tpu_custom_call.1} parent=1 // pred_region
      %73 = dma.done [#allocation6], 2048
    $region37: #{tpu_custom_call.1} parent=1 // pred_fallthru
      _
    // Predicated region
    $region38: #{tpu_custom_call.1} parent=1 // pred_check
      _
    $region39: #{tpu_custom_call.1} parent=1 // pred_check_branch
      %75 = sbr.rel (0) target = $region41
    $region40: #{tpu_custom_call.1} parent=1 // pred_region
      %76 = dma.done [#allocation6], 2048
    $region41: #{tpu_custom_call.1} parent=1 // pred_fallthru
      _
    // Predicated region
    $region42: #{tpu_custom_call.1} parent=1 // pred_check
      _
    $region43: #{tpu_custom_call.1} parent=1 // pred_check_branch
      %78 = sbr.rel (0) target = $region45
    $region44: #{tpu_custom_call.1} parent=1 // pred_region
      %79 = dma.done [#allocation9], 2048
    $region45: #{tpu_custom_call.1} parent=1 // pred_fallthru
      _
    %v80 = vld [vmem:[#allocation2] sm:$0xff]
    %v81 = vld [vmem:[#allocation5] sm:$0xff]
    %v82 = vld [vmem:[#allocation5 + $0x8] sm:$0xff]
    %v83 = vld [vmem:[#allocation5 + $0x10] sm:$0xff]
    %v84 = vld [vmem:[#allocation5 + $0x18] sm:$0xff]
    %v85 = vld [vmem:[#allocation5 + $0x20] sm:$0xff]
    %v86 = vld [vmem:[#allocation5 + $0x28] sm:$0xff]
    %v87 = vld [vmem:[#allocation5 + $0x30] sm:$0xff]
    %v88 = vld [vmem:[#allocation5 + $0x38] sm:$0xff]
    %v89 = vld [vmem:[#allocation5 + $0x40] sm:$0xff]
    %v90 = vld [vmem:[#allocation5 + $0x48] sm:$0xff]
    %v91 = vld [vmem:[#allocation5 + $0x50] sm:$0xff]
    %v92 = vld [vmem:[#allocation5 + $0x58] sm:$0xff]
    %v93 = vld [vmem:[#allocation5 + $0x60] sm:$0xff]
    %v94 = vld [vmem:[#allocation5 + $0x68] sm:$0xff]
    %v95 = vld [vmem:[#allocation5 + $0x70] sm:$0xff]
    %v96 = vld [vmem:[#allocation5 + $0x78] sm:$0xff]
    %v97 = vld [vmem:[%s2] sm:$0x1]
    %v99 = vlaneseq
    %v100 = vshrl.u32 %v99, 7
    %v101 = vsub.s32 0, %v100
    %v102 = vrot.slane %v97, %v101
    %104 = vmatprep.subr.mxu0 0.0
    %105 = vmatpush1.msra.mxu0 %v96
    %106 = vmatprep.subr.mxu0 0.0
    %107 = vmatpush1.msra.mxu0 %v95
    %108 = vmatprep.subr.mxu0 0.0
    %109 = vmatpush1.msra.mxu0 %v94
    %110 = vmatprep.subr.mxu0 0.0
    %111 = vmatpush1.msra.mxu0 %v93
    %112 = vmatprep.subr.mxu0 0.0
    %113 = vmatpush1.msra.mxu0 %v92
    %114 = vmatprep.subr.mxu0 0.0
    %115 = vmatpush1.msra.mxu0 %v91
    %116 = vmatprep.subr.mxu0 0.0
    %117 = vmatpush1.msra.mxu0 %v90
    %118 = vmatprep.subr.mxu0 0.0
    %119 = vmatpush1.msra.mxu0 %v89
    %120 = vmatprep.subr.mxu0 0.0
    %121 = vmatpush1.msra.mxu0 %v88
    %122 = vmatprep.subr.mxu0 0.0
    %123 = vmatpush1.msra.mxu0 %v87
    %124 = vmatprep.subr.mxu0 0.0
    %125 = vmatpush1.msra.mxu0 %v86
    %126 = vmatprep.subr.mxu0 0.0
    %127 = vmatpush1.msra.mxu0 %v85
    %128 = vmatprep.subr.mxu0 0.0
    %129 = vmatpush1.msra.mxu0 %v84
    %130 = vmatprep.subr.mxu0 0.0
    %131 = vmatpush1.msra.mxu0 %v83
    %132 = vmatprep.subr.mxu0 0.0
    %133 = vmatpush1.msra.mxu0 %v82
    %134 = vmatprep.subr.mxu0 0.0
    %135 = vmatpush1.msra.mxu0 %v81
    %136 = vmatprep.subr.mxu0 0.0
    %137 = vmatpush2.msra.mxu0 0.0
    %138 = vmatprep.subr.mxu0 0.0
    %139 = vmatpush2.msra.mxu0 0.0
    %140 = vmatprep.subr.mxu0 0.0
    %141 = vmatpush2.msra.mxu0 0.0
    %142 = vmatprep.subr.mxu0 0.0
    %143 = vmatpush2.msra.mxu0 0.0
    %144 = vmatprep.subr.mxu0 0.0
    %145 = vmatpush2.msra.mxu0 0.0
    %146 = vmatprep.subr.mxu0 0.0
    %147 = vmatpush2.msra.mxu0 0.0
    %148 = vmatprep.subr.mxu0 0.0
    %149 = vmatpush2.msra.mxu0 0.0
    %150 = vmatprep.subr.mxu0 0.0
    %151 = vmatpush2.msra.mxu0 0.0
    %152 = vmatprep.subr.mxu0 0.0
    %153 = vmatpush2.msra.mxu0 0.0
    %154 = vmatprep.subr.mxu0 0.0
    %155 = vmatpush2.msra.mxu0 0.0
    %156 = vmatprep.subr.mxu0 0.0
    %157 = vmatpush2.msra.mxu0 0.0
    %158 = vmatprep.subr.mxu0 0.0
    %159 = vmatpush2.msra.mxu0 0.0
    %160 = vmatprep.subr.mxu0 0.0
    %161 = vmatpush2.msra.mxu0 0.0
    %162 = vmatprep.subr.mxu0 0.0
    %163 = vmatpush2.msra.mxu0 0.0
    %164 = vmatprep.subr.mxu0 0.0
    %165 = vmatpush2.msra.mxu0 0.0
    %166 = vmatprep.subr.mxu0 0.0
    %167 = vmatpush2.msra.mxu0 0.0
    %168 = vmatprep.mubr.f32.mxu0 0.0
    %169 = vmatmul.mubr.f32.gmra.mxu0 %v80
    %v170 = vpop.f32.mrf.mxu0
    %v171 = vadd.f32 %v102, %v170
    %v172 = vpop.f32.mrf.mxu0
    %173 = vdwg.mxu0
    %v174 = vmax.f32 %v171, 0.0
    %v175 = vld [vmem:[#allocation7] sm:$0xff]
    %v176 = vld [vmem:[#allocation7 + $0x8] sm:$0xff]
    %v177 = vld [vmem:[#allocation7 + $0x10] sm:$0xff]
    %v178 = vld [vmem:[#allocation7 + $0x18] sm:$0xff]
    %v179 = vld [vmem:[#allocation7 + $0x20] sm:$0xff]
    %v180 = vld [vmem:[#allocation7 + $0x28] sm:$0xff]
    %v181 = vld [vmem:[#allocation7 + $0x30] sm:$0xff]
    %v182 = vld [vmem:[#allocation7 + $0x38] sm:$0xff]
    %v183 = vld [vmem:[#allocation7 + $0x40] sm:$0xff]
    %v184 = vld [vmem:[#allocation7 + $0x48] sm:$0xff]
    %v185 = vld [vmem:[#allocation7 + $0x50] sm:$0xff]
    %v186 = vld [vmem:[#allocation7 + $0x58] sm:$0xff]
    %v187 = vld [vmem:[#allocation7 + $0x60] sm:$0xff]
    %v188 = vld [vmem:[#allocation7 + $0x68] sm:$0xff]
    %v189 = vld [vmem:[#allocation7 + $0x70] sm:$0xff]
    %v190 = vld [vmem:[#allocation7 + $0x78] sm:$0xff]
    %v191 = vld [vmem:[%s4] sm:$0x1]
    %v193 = vlaneseq
    %v194 = vshrl.u32 %v193, 7
    %v195 = vsub.s32 0, %v194
    %v196 = vrot.slane %v191, %v195
    %198 = vmatprep.subr.mxu0 0.0
    %199 = vmatpush1.msra.mxu0 %v190
    %200 = vmatprep.subr.mxu0 0.0
    %201 = vmatpush1.msra.mxu0 %v189
    %202 = vmatprep.subr.mxu0 0.0
    %203 = vmatpush1.msra.mxu0 %v188
    %204 = vmatprep.subr.mxu0 0.0
    %205 = vmatpush1.msra.mxu0 %v187
    %206 = vmatprep.subr.mxu0 0.0
    %207 = vmatpush1.msra.mxu0 %v186
    %208 = vmatprep.subr.mxu0 0.0
    %209 = vmatpush1.msra.mxu0 %v185
    %210 = vmatprep.subr.mxu0 0.0
    %211 = vmatpush1.msra.mxu0 %v184
    %212 = vmatprep.subr.mxu0 0.0
    %213 = vmatpush1.msra.mxu0 %v183
    %214 = vmatprep.subr.mxu0 0.0
    %215 = vmatpush1.msra.mxu0 %v182
    %216 = vmatprep.subr.mxu0 0.0
    %217 = vmatpush1.msra.mxu0 %v181
    %218 = vmatprep.subr.mxu0 0.0
    %219 = vmatpush1.msra.mxu0 %v180
    %220 = vmatprep.subr.mxu0 0.0
    %221 = vmatpush1.msra.mxu0 %v179
    %222 = vmatprep.subr.mxu0 0.0
    %223 = vmatpush1.msra.mxu0 %v178
    %224 = vmatprep.subr.mxu0 0.0
    %225 = vmatpush1.msra.mxu0 %v177
    %226 = vmatprep.subr.mxu0 0.0
    %227 = vmatpush1.msra.mxu0 %v176
    %228 = vmatprep.subr.mxu0 0.0
    %229 = vmatpush1.msra.mxu0 %v175
    %230 = vmatprep.subr.mxu0 0.0
    %231 = vmatpush2.msra.mxu0 0.0
    %232 = vmatprep.subr.mxu0 0.0
    %233 = vmatpush2.msra.mxu0 0.0
    %234 = vmatprep.subr.mxu0 0.0
    %235 = vmatpush2.msra.mxu0 0.0
    %236 = vmatprep.subr.mxu0 0.0
    %237 = vmatpush2.msra.mxu0 0.0
    %238 = vmatprep.subr.mxu0 0.0
    %239 = vmatpush2.msra.mxu0 0.0
    %240 = vmatprep.subr.mxu0 0.0
    %241 = vmatpush2.msra.mxu0 0.0
    %242 = vmatprep.subr.mxu0 0.0
    %243 = vmatpush2.msra.mxu0 0.0
    %244 = vmatprep.subr.mxu0 0.0
    %245 = vmatpush2.msra.mxu0 0.0
    %246 = vmatprep.subr.mxu0 0.0
    %247 = vmatpush2.msra.mxu0 0.0
    %248 = vmatprep.subr.mxu0 0.0
    %249 = vmatpush2.msra.mxu0 0.0
    %250 = vmatprep.subr.mxu0 0.0
    %251 = vmatpush2.msra.mxu0 0.0
    %252 = vmatprep.subr.mxu0 0.0
    %253 = vmatpush2.msra.mxu0 0.0
    %254 = vmatprep.subr.mxu0 0.0
    %255 = vmatpush2.msra.mxu0 0.0
    %256 = vmatprep.subr.mxu0 0.0
    %257 = vmatpush2.msra.mxu0 0.0
    %258 = vmatprep.subr.mxu0 0.0
    %259 = vmatpush2.msra.mxu0 0.0
    %260 = vmatprep.subr.mxu0 0.0
    %261 = vmatpush2.msra.mxu0 0.0
    %262 = vmatprep.mubr.f32.mxu0 0.0
    %263 = vmatmul.mubr.f32.gmra.mxu0 %v174
    %v264 = vpop.f32.mrf.mxu0
    %v265 = vadd.f32 %v196, %v264
    %v266 = vpop.f32.mrf.mxu0
    %267 = vdwg.mxu0
    %v268 = vmax.f32 %v265, 0.0
    %v269 = vld [vmem:[#allocation8] sm:$0xff]
    %v270 = vld [vmem:[#allocation8 + $0x8] sm:$0xff]
    %v271 = vld [vmem:[#allocation8 + $0x10] sm:$0xff]
    %v272 = vld [vmem:[#allocation8 + $0x18] sm:$0xff]
    %v273 = vld [vmem:[#allocation8 + $0x20] sm:$0xff]
    %v274 = vld [vmem:[#allocation8 + $0x28] sm:$0xff]
    %v275 = vld [vmem:[#allocation8 + $0x30] sm:$0xff]
    %v276 = vld [vmem:[#allocation8 + $0x38] sm:$0xff]
    %v277 = vld [vmem:[#allocation8 + $0x40] sm:$0xff]
    %v278 = vld [vmem:[#allocation8 + $0x48] sm:$0xff]
    %v279 = vld [vmem:[#allocation8 + $0x50] sm:$0xff]
    %v280 = vld [vmem:[#allocation8 + $0x58] sm:$0xff]
    %v281 = vld [vmem:[#allocation8 + $0x60] sm:$0xff]
    %v282 = vld [vmem:[#allocation8 + $0x68] sm:$0xff]
    %v283 = vld [vmem:[#allocation8 + $0x70] sm:$0xff]
    %v284 = vld [vmem:[#allocation8 + $0x78] sm:$0xff]
    %v285 = vld [vmem:[%s6] sm:$0x1]
    %v287 = vlaneseq
    %v288 = vshrl.u32 %v287, 7
    %v289 = vsub.s32 0, %v288
    %v290 = vrot.slane %v285, %v289
    %292 = vmatprep.subr.mxu0 0.0
    %293 = vmatpush1.msra.mxu0 %v284
    %294 = vmatprep.subr.mxu0 0.0
    %295 = vmatpush1.msra.mxu0 %v283
    %296 = vmatprep.subr.mxu0 0.0
    %297 = vmatpush1.msra.mxu0 %v282
    %298 = vmatprep.subr.mxu0 0.0
    %299 = vmatpush1.msra.mxu0 %v281
    %300 = vmatprep.subr.mxu0 0.0
    %301 = vmatpush1.msra.mxu0 %v280
    %302 = vmatprep.subr.mxu0 0.0
    %303 = vmatpush1.msra.mxu0 %v279
    %304 = vmatprep.subr.mxu0 0.0
    %305 = vmatpush1.msra.mxu0 %v278
    %306 = vmatprep.subr.mxu0 0.0
    %307 = vmatpush1.msra.mxu0 %v277
    %308 = vmatprep.subr.mxu0 0.0
    %309 = vmatpush1.msra.mxu0 %v276
    %310 = vmatprep.subr.mxu0 0.0
    %311 = vmatpush1.msra.mxu0 %v275
    %312 = vmatprep.subr.mxu0 0.0
    %313 = vmatpush1.msra.mxu0 %v274
    %314 = vmatprep.subr.mxu0 0.0
    %315 = vmatpush1.msra.mxu0 %v273
    %316 = vmatprep.subr.mxu0 0.0
    %317 = vmatpush1.msra.mxu0 %v272
    %318 = vmatprep.subr.mxu0 0.0
    %319 = vmatpush1.msra.mxu0 %v271
    %320 = vmatprep.subr.mxu0 0.0
    %321 = vmatpush1.msra.mxu0 %v270
    %322 = vmatprep.subr.mxu0 0.0
    %323 = vmatpush1.msra.mxu0 %v269
    %324 = vmatprep.subr.mxu0 0.0
    %325 = vmatpush2.msra.mxu0 0.0
    %326 = vmatprep.subr.mxu0 0.0
    %327 = vmatpush2.msra.mxu0 0.0
    %328 = vmatprep.subr.mxu0 0.0
    %329 = vmatpush2.msra.mxu0 0.0
    %330 = vmatprep.subr.mxu0 0.0
    %331 = vmatpush2.msra.mxu0 0.0
    %332 = vmatprep.subr.mxu0 0.0
    %333 = vmatpush2.msra.mxu0 0.0
    %334 = vmatprep.subr.mxu0 0.0
    %335 = vmatpush2.msra.mxu0 0.0
    %336 = vmatprep.subr.mxu0 0.0
    %337 = vmatpush2.msra.mxu0 0.0
    %338 = vmatprep.subr.mxu0 0.0
    %339 = vmatpush2.msra.mxu0 0.0
    %340 = vmatprep.subr.mxu0 0.0
    %341 = vmatpush2.msra.mxu0 0.0
    %342 = vmatprep.subr.mxu0 0.0
    %343 = vmatpush2.msra.mxu0 0.0
    %344 = vmatprep.subr.mxu0 0.0
    %345 = vmatpush2.msra.mxu0 0.0
    %346 = vmatprep.subr.mxu0 0.0
    %347 = vmatpush2.msra.mxu0 0.0
    %348 = vmatprep.subr.mxu0 0.0
    %349 = vmatpush2.msra.mxu0 0.0
    %350 = vmatprep.subr.mxu0 0.0
    %351 = vmatpush2.msra.mxu0 0.0
    %352 = vmatprep.subr.mxu0 0.0
    %353 = vmatpush2.msra.mxu0 0.0
    %354 = vmatprep.subr.mxu0 0.0
    %355 = vmatpush2.msra.mxu0 0.0
    %356 = vmatprep.mubr.f32.mxu0 0.0
    %357 = vmatmul.mubr.f32.gmra.mxu0 %v268
    %v358 = vpop.f32.mrf.mxu0
    %v359 = vadd.f32 %v290, %v358
    %v360 = vpop.f32.mrf.mxu0
    %361 = vdwg.mxu0
    %362 = vst [vmem:[#allocation10] sm:$0xff] %v359
    // Predicated region
    $region46: #{tpu_custom_call.1} parent=1 // pred_check
      _
    $region47: #{tpu_custom_call.1} parent=1 // pred_check_branch
      %364 = sbr.rel (0) target = $region49
    $region48: #{tpu_custom_call.1} parent=1 // pred_region
      %s366 = ssub.s32 128, 128
      %367 = vsyncadd [#allocation4], %s366
      %s369 = sshll.u32 [#allocation10], 4
      %s370 = int_to_ptr.vmem [resolvable:$true] %s369
      %372 = dma.vmem_to_hbm [thread:$0]  %s370, 128, %s7, [#allocation4]
    $region49: #{tpu_custom_call.1} parent=1 // pred_fallthru
      _
    // Predicated region
    $region50: #{tpu_custom_call.1} parent=1 // pred_check
      _
    $region51: #{tpu_custom_call.1} parent=1 // pred_check_branch
      %374 = sbr.rel (0) target = $region53
    $region52: #{tpu_custom_call.1} parent=1 // pred_region
      %375 = dma.done [#allocation4], 128
    $region53: #{tpu_custom_call.1} parent=1 // pred_fallthru
      _
    %376 = vsyncpa [#allocation3], 1
    %377 = vsyncpa [#allocation6], 1
    %378 = vsyncpa [#allocation9], 1
    %379 = vsyncpa [#allocation4], 1

// kernel: tpu_custom_call.1
$region0: #{tpu_custom_call.1}
  #allocation0 [shape = 'u32[]', space=smem, size = 0x4, offset = 0x4, fixed_abs, tag = 'smem constant byte address 0x4 - core index']
  #allocation1 [shape = 'u32[144,128]{1,0:T(1,128)}', space=vmem, size = 0x12000, scoped, tag = 'internal scratch']
  %s0 = inlined_call_operand.hbm [shape: f32[8,128], index: 0, kind: input, shape index: {}]
  %s1 = inlined_call_operand.hbm [shape: f32[128,128], index: 1, kind: input, shape index: {}]
  %s2 = inlined_call_operand.vmem [shape: f32[1,128], index: 2, kind: input, shape index: {}]
  %s3 = inlined_call_operand.hbm [shape: f32[1,128,128], index: 3, kind: input, shape index: {}]
  %s4 = inlined_call_operand.vmem [shape: f32[1,128], index: 4, kind: input, shape index: {}]
  %s5 = inlined_call_operand.hbm [shape: f32[128,128], index: 5, kind: input, shape index: {}]
  %s6 = inlined_call_operand.vmem [shape: f32[1,128], index: 6, kind: input, shape index: {}]
  %s7 = inlined_call_operand.hbm [shape: f32[8,128], index: 7, kind: output, shape index: {}]
  %s8 = sld [smem:[#allocation0]]
  $region54: #{tpu_custom_call.1} parent=0
    _
  %s10 = ssub.s32 1, %s8
  %s11 = scalar_select 0, %s10, %s8
  $region1: #{tpu_custom_call.1} parent=0
    #allocation2 [shape = 'u8[4096]{0}', space=vmem, size = 0x1000, scoped, tag = 'input window, operand 0, single buffered']
    #allocation3 [shape = 's32[1]{0}', space=sflag, size = 0x4, scoped, tag = 'scoped memory for tpu_custom_call.1']
    #allocation4 [shape = 's32[1]{0}', space=sflag, size = 0x4, scoped, tag = 'scoped memory for tpu_custom_call.1']
    #allocation5 [shape = 'u8[65536]{0}', space=vmem, size = 0x10000, scoped, tag = 'input window, operand 1, single buffered']
    #allocation6 [shape = 's32[1]{0}', space=sflag, size = 0x4, scoped, tag = 'scoped memory for tpu_custom_call.1']
    #allocation7 [shape = 'u8[65536]{0}', space=vmem, size = 0x10000, scoped, tag = 'input window, operand 3, single buffered']
    #allocation8 [shape = 'u8[65536]{0}', space=vmem, size = 0x10000, scoped, tag = 'input window, operand 5, single buffered']
    #allocation9 [shape = 's32[1]{0}', space=sflag, size = 0x4, scoped, tag = 'scoped memory for tpu_custom_call.1']
    #allocation10 [shape = 'u8[4096]{0}', space=vmem, size = 0x1000, scoped, tag = 'output window, operand 0, single buffered']
    %12 = vsyncpa [#allocation3], 0
    %13 = vsyncpa [#allocation6], 0
    %14 = vsyncpa [#allocation9], 0
    %15 = vsyncpa [#allocation4], 0
    // Predicated region
    $region2: #{tpu_custom_call.1} parent=1 // pred_check
      _
    $region3: #{tpu_custom_call.1} parent=1 // pred_check_branch
      %17 = sbr.rel (0) target = $region5
    $region4: #{tpu_custom_call.1} parent=1 // pred_region
      %s19 = ssub.s32 128, 128
      %20 = vsyncadd [#allocation3], %s19
      %s22 = sshll.u32 [#allocation2], 4
      %s23 = int_to_ptr.vmem [resolvable:$true] %s22
      %25 = dma.hbm_to_vmem [thread:$0]  %s0, 128, %s23, [#allocation3]
    $region5: #{tpu_custom_call.1} parent=1 // pred_fallthru
      _
    // Predicated region
    $region6: #{tpu_custom_call.1} parent=1 // pred_check
      _
    $region7: #{tpu_custom_call.1} parent=1 // pred_check_branch
      %27 = sbr.rel (0) target = $region9
    $region8: #{tpu_custom_call.1} parent=1 // pred_region
      %s29 = ssub.s32 2048, 2048
      %30 = vsyncadd [#allocation6], %s29
      %s31 = sshll.u32 [#allocation5], 4
      %s32 = int_to_ptr.vmem [resolvable:$true] %s31
      %37 = dma.hbm_to_vmem [thread:$0]  %s1, 2048, %s32, [#allocation6], 128, 128, 8
    $region9: #{tpu_custom_call.1} parent=1 // pred_fallthru
      _
    // Predicated region
    $region10: #{tpu_custom_call.1} parent=1 // pred_check
      _
    $region11: #{tpu_custom_call.1} parent=1 // pred_check_branch
      %39 = sbr.rel (0) target = $region13
    $region12: #{tpu_custom_call.1} parent=1 // pred_region
      _
    $region13: #{tpu_custom_call.1} parent=1 // pred_fallthru
      _
    // Predicated region
    $region14: #{tpu_custom_call.1} parent=1 // pred_check
      _
    $region15: #{tpu_custom_call.1} parent=1 // pred_check_branch
      %41 = sbr.rel (0) target = $region17
    $region16: #{tpu_custom_call.1} parent=1 // pred_region
      %s43 = ssub.s32 2048, 2048
      %44 = vsyncadd [#allocation6], %s43
      %s45 = sshll.u32 [#allocation7], 4
      %s46 = int_to_ptr.vmem [resolvable:$true] %s45
      %51 = dma.hbm_to_vmem [thread:$0]  %s3, 2048, %s46, [#allocation6], 128, 128, 8
    $region17: #{tpu_custom_call.1} parent=1 // pred_fallthru
      _
    // Predicated region
    $region18: #{tpu_custom_call.1} parent=1 // pred_check
      _
    $region19: #{tpu_custom_call.1} parent=1 // pred_check_branch
      %53 = sbr.rel (0) target = $region21
    $region20: #{tpu_custom_call.1} parent=1 // pred_region
      _
    $region21: #{tpu_custom_call.1} parent=1 // pred_fallthru
      _
    // Predicated region
    $region22: #{tpu_custom_call.1} parent=1 // pred_check
      _
    $region23: #{tpu_custom_call.1} parent=1 // pred_check_branch
      %55 = sbr.rel (0) target = $region25
    $region24: #{tpu_custom_call.1} parent=1 // pred_region
      %s57 = ssub.s32 2048, 2048
      %58 = vsyncadd [#allocation9], %s57
      %s59 = sshll.u32 [#allocation8], 4
      %s60 = int_to_ptr.vmem [resolvable:$true] %s59
      %65 = dma.hbm_to_vmem [thread:$0]  %s5, 2048, %s60, [#allocation9], 128, 128, 8
    $region25: #{tpu_custom_call.1} parent=1 // pred_fallthru
      _
    // Predicated region
    $region26: #{tpu_custom_call.1} parent=1 // pred_check
      _
    $region27: #{tpu_custom_call.1} parent=1 // pred_check_branch
      %67 = sbr.rel (0) target = $region29
    $region28: #{tpu_custom_call.1} parent=1 // pred_region
      _
    $region29: #{tpu_custom_call.1} parent=1 // pred_fallthru
      _
    // Predicated region
    $region30: #{tpu_custom_call.1} parent=1 // pred_check
      _
    $region31: #{tpu_custom_call.1} parent=1 // pred_check_branch
      %69 = sbr.rel (0) target = $region33
    $region32: #{tpu_custom_call.1} parent=1 // pred_region
      %70 = dma.done [#allocation3], 128
    $region33: #{tpu_custom_call.1} parent=1 // pred_fallthru
      _
    // Predicated region
    $region34: #{tpu_custom_call.1} parent=1 // pred_check
      _
    $region35: #{tpu_custom_call.1} parent=1 // pred_check_branch
      %72 = sbr.rel (0) target = $region37
    $region36: #{tpu_custom_call.1} parent=1 // pred_region
      %73 = dma.done [#allocation6], 2048
    $region37: #{tpu_custom_call.1} parent=1 // pred_fallthru
      _
    // Predicated region
    $region38: #{tpu_custom_call.1} parent=1 // pred_check
      _
    $region39: #{tpu_custom_call.1} parent=1 // pred_check_branch
      %75 = sbr.rel (0) target = $region41
    $region40: #{tpu_custom_call.1} parent=1 // pred_region
      %76 = dma.done [#allocation6], 2048
    $region41: #{tpu_custom_call.1} parent=1 // pred_fallthru
      _
    // Predicated region
    $region42: #{tpu_custom_call.1} parent=1 // pred_check
      _
    $region43: #{tpu_custom_call.1} parent=1 // pred_check_branch
      %78 = sbr.rel (0) target = $region45
    $region44: #{tpu_custom_call.1} parent=1 // pred_region
      %79 = dma.done [#allocation9], 2048
    $region45: #{tpu_custom_call.1} parent=1 // pred_fallthru
      _
    %v80 = vld [vmem:[#allocation2] sm:$0xff]
    %v81 = vld [vmem:[#allocation5] sm:$0xff]
    %v82 = vld [vmem:[#allocation5 + $0x8] sm:$0xff]
    %v83 = vld [vmem:[#allocation5 + $0x10] sm:$0xff]
    %v84 = vld [vmem:[#allocation5 + $0x18] sm:$0xff]
    %v85 = vld [vmem:[#allocation5 + $0x20] sm:$0xff]
    %v86 = vld [vmem:[#allocation5 + $0x28] sm:$0xff]
    %v87 = vld [vmem:[#allocation5 + $0x30] sm:$0xff]
    %v88 = vld [vmem:[#allocation5 + $0x38] sm:$0xff]
    %v89 = vld [vmem:[#allocation5 + $0x40] sm:$0xff]
    %v90 = vld [vmem:[#allocation5 + $0x48] sm:$0xff]
    %v91 = vld [vmem:[#allocation5 + $0x50] sm:$0xff]
    %v92 = vld [vmem:[#allocation5 + $0x58] sm:$0xff]
    %v93 = vld [vmem:[#allocation5 + $0x60] sm:$0xff]
    %v94 = vld [vmem:[#allocation5 + $0x68] sm:$0xff]
    %v95 = vld [vmem:[#allocation5 + $0x70] sm:$0xff]
    %v96 = vld [vmem:[#allocation5 + $0x78] sm:$0xff]
    %v97 = vld [vmem:[%s2] sm:$0x1]
    %v99 = vlaneseq
    %v100 = vshrl.u32 %v99, 7
    %v101 = vsub.s32 0, %v100
    %v102 = vrot.slane %v97, %v101
    %104 = vmatprep.subr.mxu0 0.0
    %105 = vmatpush1.msra.mxu0 %v96
    %106 = vmatprep.subr.mxu0 0.0
    %107 = vmatpush1.msra.mxu0 %v95
    %108 = vmatprep.subr.mxu0 0.0
    %109 = vmatpush1.msra.mxu0 %v94
    %110 = vmatprep.subr.mxu0 0.0
    %111 = vmatpush1.msra.mxu0 %v93
    %112 = vmatprep.subr.mxu0 0.0
    %113 = vmatpush1.msra.mxu0 %v92
    %114 = vmatprep.subr.mxu0 0.0
    %115 = vmatpush1.msra.mxu0 %v91
    %116 = vmatprep.subr.mxu0 0.0
    %117 = vmatpush1.msra.mxu0 %v90
    %118 = vmatprep.subr.mxu0 0.0
    %119 = vmatpush1.msra.mxu0 %v89
    %120 = vmatprep.subr.mxu0 0.0
    %121 = vmatpush1.msra.mxu0 %v88
    %122 = vmatprep.subr.mxu0 0.0
    %123 = vmatpush1.msra.mxu0 %v87
    %124 = vmatprep.subr.mxu0 0.0
    %125 = vmatpush1.msra.mxu0 %v86
    %126 = vmatprep.subr.mxu0 0.0
    %127 = vmatpush1.msra.mxu0 %v85
    %128 = vmatprep.subr.mxu0 0.0
    %129 = vmatpush1.msra.mxu0 %v84
    %130 = vmatprep.subr.mxu0 0.0
    %131 = vmatpush1.msra.mxu0 %v83
    %132 = vmatprep.subr.mxu0 0.0
    %133 = vmatpush1.msra.mxu0 %v82
    %134 = vmatprep.subr.mxu0 0.0
    %135 = vmatpush1.msra.mxu0 %v81
    %136 = vmatprep.subr.mxu0 0.0
    %137 = vmatpush2.msra.mxu0 0.0
    %138 = vmatprep.subr.mxu0 0.0
    %139 = vmatpush2.msra.mxu0 0.0
    %140 = vmatprep.subr.mxu0 0.0
    %141 = vmatpush2.msra.mxu0 0.0
    %142 = vmatprep.subr.mxu0 0.0
    %143 = vmatpush2.msra.mxu0 0.0
    %144 = vmatprep.subr.mxu0 0.0
    %145 = vmatpush2.msra.mxu0 0.0
    %146 = vmatprep.subr.mxu0 0.0
    %147 = vmatpush2.msra.mxu0 0.0
    %148 = vmatprep.subr.mxu0 0.0
    %149 = vmatpush2.msra.mxu0 0.0
    %150 = vmatprep.subr.mxu0 0.0
    %151 = vmatpush2.msra.mxu0 0.0
    %152 = vmatprep.subr.mxu0 0.0
    %153 = vmatpush2.msra.mxu0 0.0
    %154 = vmatprep.subr.mxu0 0.0
    %155 = vmatpush2.msra.mxu0 0.0
    %156 = vmatprep.subr.mxu0 0.0
    %157 = vmatpush2.msra.mxu0 0.0
    %158 = vmatprep.subr.mxu0 0.0
    %159 = vmatpush2.msra.mxu0 0.0
    %160 = vmatprep.subr.mxu0 0.0
    %161 = vmatpush2.msra.mxu0 0.0
    %162 = vmatprep.subr.mxu0 0.0
    %163 = vmatpush2.msra.mxu0 0.0
    %164 = vmatprep.subr.mxu0 0.0
    %165 = vmatpush2.msra.mxu0 0.0
    %166 = vmatprep.subr.mxu0 0.0
    %167 = vmatpush2.msra.mxu0 0.0
    %168 = vmatprep.mubr.f32.mxu0 0.0
    %169 = vmatmul.mubr.f32.gmra.mxu0 %v80
    %v170 = vpop.f32.mrf.mxu0
    %v171 = vadd.f32 %v102, %v170
    %v172 = vpop.f32.mrf.mxu0
    %173 = vdwg.mxu0
    %v174 = vmax.f32 %v171, 0.0
    %v175 = vld [vmem:[#allocation7] sm:$0xff]
    %v176 = vld [vmem:[#allocation7 + $0x8] sm:$0xff]
    %v177 = vld [vmem:[#allocation7 + $0x10] sm:$0xff]
    %v178 = vld [vmem:[#allocation7 + $0x18] sm:$0xff]
    %v179 = vld [vmem:[#allocation7 + $0x20] sm:$0xff]
    %v180 = vld [vmem:[#allocation7 + $0x28] sm:$0xff]
    %v181 = vld [vmem:[#allocation7 + $0x30] sm:$0xff]
    %v182 = vld [vmem:[#allocation7 + $0x38] sm:$0xff]
    %v183 = vld [vmem:[#allocation7 + $0x40] sm:$0xff]
    %v184 = vld [vmem:[#allocation7 + $0x48] sm:$0xff]
    %v185 = vld [vmem:[#allocation7 + $0x50] sm:$0xff]
    %v186 = vld [vmem:[#allocation7 + $0x58] sm:$0xff]
    %v187 = vld [vmem:[#allocation7 + $0x60] sm:$0xff]
    %v188 = vld [vmem:[#allocation7 + $0x68] sm:$0xff]
    %v189 = vld [vmem:[#allocation7 + $0x70] sm:$0xff]
    %v190 = vld [vmem:[#allocation7 + $0x78] sm:$0xff]
    %v191 = vld [vmem:[%s4] sm:$0x1]
    %v193 = vlaneseq
    %v194 = vshrl.u32 %v193, 7
    %v195 = vsub.s32 0, %v194
    %v196 = vrot.slane %v191, %v195
    %198 = vmatprep.subr.mxu0 0.0
    %199 = vmatpush1.msra.mxu0 %v190
    %200 = vmatprep.subr.mxu0 0.0
    %201 = vmatpush1.msra.mxu0 %v189
    %202 = vmatprep.subr.mxu0 0.0
    %203 = vmatpush1.msra.mxu0 %v188
    %204 = vmatprep.subr.mxu0 0.0
    %205 = vmatpush1.msra.mxu0 %v187
    %206 = vmatprep.subr.mxu0 0.0
    %207 = vmatpush1.msra.mxu0 %v186
    %208 = vmatprep.subr.mxu0 0.0
    %209 = vmatpush1.msra.mxu0 %v185
    %210 = vmatprep.subr.mxu0 0.0
    %211 = vmatpush1.msra.mxu0 %v184
    %212 = vmatprep.subr.mxu0 0.0
    %213 = vmatpush1.msra.mxu0 %v183
    %214 = vmatprep.subr.mxu0 0.0
    %215 = vmatpush1.msra.mxu0 %v182
    %216 = vmatprep.subr.mxu0 0.0
    %217 = vmatpush1.msra.mxu0 %v181
    %218 = vmatprep.subr.mxu0 0.0
    %219 = vmatpush1.msra.mxu0 %v180
    %220 = vmatprep.subr.mxu0 0.0
    %221 = vmatpush1.msra.mxu0 %v179
    %222 = vmatprep.subr.mxu0 0.0
    %223 = vmatpush1.msra.mxu0 %v178
    %224 = vmatprep.subr.mxu0 0.0
    %225 = vmatpush1.msra.mxu0 %v177
    %226 = vmatprep.subr.mxu0 0.0
    %227 = vmatpush1.msra.mxu0 %v176
    %228 = vmatprep.subr.mxu0 0.0
    %229 = vmatpush1.msra.mxu0 %v175
    %230 = vmatprep.subr.mxu0 0.0
    %231 = vmatpush2.msra.mxu0 0.0
    %232 = vmatprep.subr.mxu0 0.0
    %233 = vmatpush2.msra.mxu0 0.0
    %234 = vmatprep.subr.mxu0 0.0
    %235 = vmatpush2.msra.mxu0 0.0
    %236 = vmatprep.subr.mxu0 0.0
    %237 = vmatpush2.msra.mxu0 0.0
    %238 = vmatprep.subr.mxu0 0.0
    %239 = vmatpush2.msra.mxu0 0.0
    %240 = vmatprep.subr.mxu0 0.0
    %241 = vmatpush2.msra.mxu0 0.0
    %242 = vmatprep.subr.mxu0 0.0
    %243 = vmatpush2.msra.mxu0 0.0
    %244 = vmatprep.subr.mxu0 0.0
    %245 = vmatpush2.msra.mxu0 0.0
    %246 = vmatprep.subr.mxu0 0.0
    %247 = vmatpush2.msra.mxu0 0.0
    %248 = vmatprep.subr.mxu0 0.0
    %249 = vmatpush2.msra.mxu0 0.0
    %250 = vmatprep.subr.mxu0 0.0
    %251 = vmatpush2.msra.mxu0 0.0
    %252 = vmatprep.subr.mxu0 0.0
    %253 = vmatpush2.msra.mxu0 0.0
    %254 = vmatprep.subr.mxu0 0.0
    %255 = vmatpush2.msra.mxu0 0.0
    %256 = vmatprep.subr.mxu0 0.0
    %257 = vmatpush2.msra.mxu0 0.0
    %258 = vmatprep.subr.mxu0 0.0
    %259 = vmatpush2.msra.mxu0 0.0
    %260 = vmatprep.subr.mxu0 0.0
    %261 = vmatpush2.msra.mxu0 0.0
    %262 = vmatprep.mubr.f32.mxu0 0.0
    %263 = vmatmul.mubr.f32.gmra.mxu0 %v174
    %v264 = vpop.f32.mrf.mxu0
    %v265 = vadd.f32 %v196, %v264
    %v266 = vpop.f32.mrf.mxu0
    %267 = vdwg.mxu0
    %v268 = vmax.f32 %v265, 0.0
    %v269 = vld [vmem:[#allocation8] sm:$0xff]
    %v270 = vld [vmem:[#allocation8 + $0x8] sm:$0xff]
    %v271 = vld [vmem:[#allocation8 + $0x10] sm:$0xff]
    %v272 = vld [vmem:[#allocation8 + $0x18] sm:$0xff]
    %v273 = vld [vmem:[#allocation8 + $0x20] sm:$0xff]
    %v274 = vld [vmem:[#allocation8 + $0x28] sm:$0xff]
    %v275 = vld [vmem:[#allocation8 + $0x30] sm:$0xff]
    %v276 = vld [vmem:[#allocation8 + $0x38] sm:$0xff]
    %v277 = vld [vmem:[#allocation8 + $0x40] sm:$0xff]
    %v278 = vld [vmem:[#allocation8 + $0x48] sm:$0xff]
    %v279 = vld [vmem:[#allocation8 + $0x50] sm:$0xff]
    %v280 = vld [vmem:[#allocation8 + $0x58] sm:$0xff]
    %v281 = vld [vmem:[#allocation8 + $0x60] sm:$0xff]
    %v282 = vld [vmem:[#allocation8 + $0x68] sm:$0xff]
    %v283 = vld [vmem:[#allocation8 + $0x70] sm:$0xff]
    %v284 = vld [vmem:[#allocation8 + $0x78] sm:$0xff]
    %v285 = vld [vmem:[%s6] sm:$0x1]
    %v287 = vlaneseq
    %v288 = vshrl.u32 %v287, 7
    %v289 = vsub.s32 0, %v288
    %v290 = vrot.slane %v285, %v289
    %292 = vmatprep.subr.mxu0 0.0
    %293 = vmatpush1.msra.mxu0 %v284
    %294 = vmatprep.subr.mxu0 0.0
    %295 = vmatpush1.msra.mxu0 %v283
    %296 = vmatprep.subr.mxu0 0.0
    %297 = vmatpush1.msra.mxu0 %v282
    %298 = vmatprep.subr.mxu0 0.0
    %299 = vmatpush1.msra.mxu0 %v281
    %300 = vmatprep.subr.mxu0 0.0
    %301 = vmatpush1.msra.mxu0 %v280
    %302 = vmatprep.subr.mxu0 0.0
    %303 = vmatpush1.msra.mxu0 %v279
    %304 = vmatprep.subr.mxu0 0.0
    %305 = vmatpush1.msra.mxu0 %v278
    %306 = vmatprep.subr.mxu0 0.0
    %307 = vmatpush1.msra.mxu0 %v277
    %308 = vmatprep.subr.mxu0 0.0
    %309 = vmatpush1.msra.mxu0 %v276
    %310 = vmatprep.subr.mxu0 0.0
    %311 = vmatpush1.msra.mxu0 %v275
    %312 = vmatprep.subr.mxu0 0.0
    %313 = vmatpush1.msra.mxu0 %v274
    %314 = vmatprep.subr.mxu0 0.0
    %315 = vmatpush1.msra.mxu0 %v273
    %316 = vmatprep.subr.mxu0 0.0
    %317 = vmatpush1.msra.mxu0 %v272
    %318 = vmatprep.subr.mxu0 0.0
    %319 = vmatpush1.msra.mxu0 %v271
    %320 = vmatprep.subr.mxu0 0.0
    %321 = vmatpush1.msra.mxu0 %v270
    %322 = vmatprep.subr.mxu0 0.0
    %323 = vmatpush1.msra.mxu0 %v269
    %324 = vmatprep.subr.mxu0 0.0
    %325 = vmatpush2.msra.mxu0 0.0
    %326 = vmatprep.subr.mxu0 0.0
    %327 = vmatpush2.msra.mxu0 0.0
    %328 = vmatprep.subr.mxu0 0.0
    %329 = vmatpush2.msra.mxu0 0.0
    %330 = vmatprep.subr.mxu0 0.0
    %331 = vmatpush2.msra.mxu0 0.0
    %332 = vmatprep.subr.mxu0 0.0
    %333 = vmatpush2.msra.mxu0 0.0
    %334 = vmatprep.subr.mxu0 0.0
    %335 = vmatpush2.msra.mxu0 0.0
    %336 = vmatprep.subr.mxu0 0.0
    %337 = vmatpush2.msra.mxu0 0.0
    %338 = vmatprep.subr.mxu0 0.0
    %339 = vmatpush2.msra.mxu0 0.0
    %340 = vmatprep.subr.mxu0 0.0
    %341 = vmatpush2.msra.mxu0 0.0
    %342 = vmatprep.subr.mxu0 0.0
    %343 = vmatpush2.msra.mxu0 0.0
    %344 = vmatprep.subr.mxu0 0.0
    %345 = vmatpush2.msra.mxu0 0.0
    %346 = vmatprep.subr.mxu0 0.0
    %347 = vmatpush2.msra.mxu0 0.0
    %348 = vmatprep.subr.mxu0 0.0
    %349 = vmatpush2.msra.mxu0 0.0
    %350 = vmatprep.subr.mxu0 0.0
    %351 = vmatpush2.msra.mxu0 0.0
    %352 = vmatprep.subr.mxu0 0.0
    %353 = vmatpush2.msra.mxu0 0.0
    %354 = vmatprep.subr.mxu0 0.0
    %355 = vmatpush2.msra.mxu0 0.0
    %356 = vmatprep.mubr.f32.mxu0 0.0
    %357 = vmatmul.mubr.f32.gmra.mxu0 %v268
    %v358 = vpop.f32.mrf.mxu0
    %v359 = vadd.f32 %v290, %v358
    %v360 = vpop.f32.mrf.mxu0
    %361 = vdwg.mxu0
    %362 = vst [vmem:[#allocation10] sm:$0xff] %v359
    // Predicated region
    $region46: #{tpu_custom_call.1} parent=1 // pred_check
      _
    $region47: #{tpu_custom_call.1} parent=1 // pred_check_branch
      %364 = sbr.rel (0) target = $region49
    $region48: #{tpu_custom_call.1} parent=1 // pred_region
      %s366 = ssub.s32 128, 128
      %367 = vsyncadd [#allocation4], %s366
      %s369 = sshll.u32 [#allocation10], 4
      %s370 = int_to_ptr.vmem [resolvable:$true] %s369
      %372 = dma.vmem_to_hbm [thread:$0]  %s370, 128, %s7, [#allocation4]
    $region49: #{tpu_custom_call.1} parent=1 // pred_fallthru
      _
    // Predicated region
    $region50: #{tpu_custom_call.1} parent=1 // pred_check
      _
    $region51: #{tpu_custom_call.1} parent=1 // pred_check_branch
      %374 = sbr.rel (0) target = $region53
    $region52: #{tpu_custom_call.1} parent=1 // pred_region
      %375 = dma.done [#allocation4], 128
    $region53: #{tpu_custom_call.1} parent=1 // pred_fallthru
      _
    %376 = vsyncpa [#allocation3], 1
    %377 = vsyncpa [#allocation6], 1
    %378 = vsyncpa [#allocation9], 1
    %379 = vsyncpa [#allocation4], 1

</llo_original>
